<compile_context>
chip_gen: v7x
topology: tpu7x:2x2x1
jax: 0.10.0
libtpu: 0.0.40
codegen_flags: <defaults>
</compile_context>

<pallas_src>
import jax
import jax.numpy as jnp
from jax.experimental import pallas as pl
from jax.experimental.pallas import tpu as pltpu

_LANE = 128
_VMEM_TM_BUDGET = 28 * 1024 * 1024     # auto-shrink the row tile above this working set
_VMEM_LIMIT_BYTES = 48 * 1024 * 1024   # explicit scoped VMEM limit (< v7x 64 MiB physical)


def _round_up(x, m):
    return ((x + m - 1) // m) * m


def _make_kernel(n_cat, v_pad, compute_dtype):
    """out = onehot(ids) @ W_cat + num @ W_num + b ; one-hot built in VMEM/vregs."""

    def kernel(ids_ref, num_ref, wcat_ref, wnum_ref, b_ref, out_ref):
        ids = ids_ref[...]                                    # (TM, cat_len) int32, offsets pre-added
        tm = ids.shape[0]
        iota = jax.lax.broadcasted_iota(jnp.int32, (tm, v_pad), 1)
        hit = iota == ids[:, 0:1]                             # vocab ranges are disjoint -> OR == sum
        for i in range(1, n_cat):
            hit = jnp.logical_or(hit, iota == ids[:, i:i + 1])
        onehot = hit.astype(compute_dtype)                    # (TM, v_pad), cast once

        acc = jnp.dot(onehot, wcat_ref[...], preferred_element_type=jnp.float32)
        num = num_ref[...].astype(compute_dtype)              # (TM, num_dim)
        acc = acc + jnp.dot(num, wnum_ref[...], preferred_element_type=jnp.float32)
        out_ref[...] = (acc + b_ref[...]).astype(out_ref.dtype)

    return kernel


def feature_embedder_forward(x, params, cat_cols, num_dim, feature_dim,
                             tm=1024, compute_dtype=jnp.bfloat16,
                             out_dtype=jnp.float32, return_padded=False):
    """
    x: (batch, seq_len, cat_len + num_dim) float32. First cat_len features are integer
       category ids (stored as floats, as in the PyTorch module), rest are numeric.
    params: dict with:
        'emb_tables': list of (vocab_i, emb_dim_i) f32 tables (one per cat col)
        'w_num': (num_dim, num_dim)   (y = x @ w_num + b_num)
        'b_num': (1, num_dim)
        'w_out': (cat_out_dim + num_dim, feature_dim)
        'b_out': (1, feature_dim)
    returns: (batch, seq_len, feature_dim) in out_dtype
             (or (batch, seq_len, n_pad) lane-padded if return_padded=True).
    """
    cat_len = len(cat_cols)
    emb_tables = params["emb_tables"]
    n_cat = len(emb_tables)
    assert n_cat == cat_len >= 1 and num_dim >= 1
    vocab_sizes = [int(t.shape[0]) for t in emb_tables]
    emb_dims = [int(t.shape[1]) for t in emb_tables]
    v_total = sum(vocab_sizes)
    cat_out_dim = sum(emb_dims)

    w_out, b_out = params["w_out"], params["b_out"]
    w_num, b_num = params["w_num"], params["b_num"]

    v_pad = _round_up(v_total, _LANE)
    n_pad = _round_up(feature_dim, _LANE)

    # ---- algebraic fusion of emb tables / num_linear / out_linear (XLA side, done once) ----
    w_blocks, coff = [], 0
    for t, d in zip(emb_tables, emb_dims):
        w_blocks.append(jnp.dot(t, w_out[coff:coff + d, :]))          # (vocab_i, F)
        coff += d
    w_cat = jnp.concatenate(w_blocks, axis=0)                         # (V_total, F)
    w_cat = jnp.pad(w_cat, ((0, v_pad - v_total), (0, n_pad - feature_dim)))
    w_cat = w_cat.astype(compute_dtype)                               # (v_pad, n_pad)
    w_num_f = jnp.dot(w_num, w_out[cat_out_dim:, :])                  # (num_dim, F)
    w_num_f = jnp.pad(w_num_f, ((0, 0), (0, n_pad - feature_dim))).astype(compute_dtype)
    b_fused = b_out + jnp.dot(b_num, w_out[cat_out_dim:, :])          # (1, F)
    b_fused = jnp.pad(b_fused, ((0, 0), (0, n_pad - feature_dim))).astype(jnp.float32)

    # ---- compact per-row inputs: no zero one-hot lanes, ids exact in int32 ----
    bsz, seq, f_in = x.shape
    assert f_in == cat_len + num_dim
    rows = bsz * seq
    x2d = x.reshape(rows, f_in)

    vocab_offsets, acc = [], 0
    for v in vocab_sizes:
        vocab_offsets.append(acc)
        acc += v
    offsets = jnp.asarray(vocab_offsets, jnp.int32)                   # (cat_len,)
    ids2d = x2d[:, :cat_len].astype(jnp.int32) + offsets              # offsets hoisted to wrapper
    num2d = x2d[:, cat_len:].astype(compute_dtype)                    # bf16 in HBM by default

    # ---- row tile: amortize per-step overhead, >= 2 grid steps (v7x megacore), VMEM budget ----
    cdt = jnp.dtype(compute_dtype).itemsize
    odt = jnp.dtype(out_dtype).itemsize
    cat_lane = _round_up(cat_len, _LANE)
    num_lane = _round_up(num_dim, _LANE)

    def vmem_bytes(t):
        # double-buffered row inputs/outputs + in-kernel onehot/acc + (double-buffered) weights
        return (2 * t * cat_lane * 4 + 2 * t * num_lane * cdt + 2 * t * n_pad * odt
                + t * v_pad * cdt + t * n_pad * 4
                + 2 * (v_pad + num_lane) * n_pad * cdt + 2 * 8 * n_pad * 4)

    tm_eff = max(8, min(tm, _round_up(-(-rows // 2), 8)))   # aim for grid >= 2
    while tm_eff > 8 and vmem_bytes(tm_eff) > _VMEM_TM_BUDGET:
        tm_eff = max(8, _round_up(tm_eff // 2, 8))
    # NOTE: for very large vocabs (v_pad * n_pad weights alone near the VMEM limit) the
    # one-hot matmul K axis would need tiling with an f32 accumulator; not needed here.

    padded_rows = _round_up(rows, tm_eff)
    if padded_rows != rows:
        ids2d = jnp.pad(ids2d, ((0, padded_rows - rows), (0, 0)))
        num2d = jnp.pad(num2d, ((0, padded_rows - rows), (0, 0)))

    kernel = _make_kernel(n_cat, v_pad, compute_dtype)
    grid = (padded_rows // tm_eff,)

    def run(use_buffered):
        wkw = {"pipeline_mode": pl.Buffered(1)} if use_buffered else {}
        grid_spec = pltpu.PrefetchScalarGridSpec(
            num_scalar_prefetch=0,
            grid=grid,
            in_specs=[
                pl.BlockSpec((tm_eff, cat_len), lambda i: (i, 0)),    # ids (compact, int32)
                pl.BlockSpec((tm_eff, num_dim), lambda i: (i, 0)),    # numeric feats
                pl.BlockSpec((v_pad, n_pad), lambda i: (0, 0), **wkw),   # fused cat weight
                pl.BlockSpec((num_dim, n_pad), lambda i: (0, 0), **wkw), # fused num weight
                pl.BlockSpec((1, n_pad), lambda i: (0, 0), **wkw),       # fused bias
            ],
            out_specs=pl.BlockSpec((tm_eff, n_pad), lambda i: (i, 0)),
        )
        return pl.pallas_call(
            kernel,
            out_shape=jax.ShapeDtypeStruct((padded_rows, n_pad), out_dtype),
            grid_spec=grid_spec,
            compiler_params=pltpu.CompilerParams(
                dimension_semantics=("parallel",),
                vmem_limit_bytes=_VMEM_LIMIT_BYTES,
            ),
        )(ids2d, num2d, w_cat, w_num_f, b_fused)

    try:
        out2d = run(True)        # single-buffered residency for grid-invariant weights/bias
    except Exception:
        out2d = run(False)       # fallback if pipeline_mode=pl.Buffered(1) is unsupported

    out2d = out2d[:rows]
    if return_padded:
        return out2d.reshape(bsz, seq, n_pad)   # lane-dense layout, consumer fuses the slice
    return out2d[:, :feature_dim].reshape(bsz, seq, feature_dim)


def _reference_forward(x, params, cat_cols, num_dim, feature_dim):
    """Pure-JAX reference matching the PyTorch forward (unfused)."""
    cat_len = len(cat_cols)
    cat_x = x[..., :cat_len].astype(jnp.int32)
    num_x = x[..., cat_len:]
    embs = [jnp.take(params["emb_tables"][i], cat_x[..., i], axis=0)
            for i in range(cat_len)]
    cat_emb = jnp.concatenate(embs, axis=-1)
    num_emb = num_x @ params["w_num"] + params["b_num"][0]
    feat = jnp.concatenate([cat_emb, num_emb], axis=-1)
    return feat @ params["w_out"] + params["b_out"][0]


if __name__ == "__main__":
    # --- module configuration (small, consistent with the PyTorch __init__) ---
    cat_cols = ["c0", "c1", "c2"]
    cat_unique = {"c0": 10, "c1": 7, "c2": 30}
    cat_emb_dim = 16
    num_dim = 16
    feature_dim = 32

    # replicate emb_dim_real = max(min(cat_emb_dim, unique//2 + 1), 4)
    emb_dims = []
    for c in cat_cols:
        d = min(cat_emb_dim, cat_unique[c] // 2 + 1)
        emb_dims.append(max(d, 4))
    cat_out_dim = sum(emb_dims)                      # 6 + 4 + 16 = 26
    cat_len = len(cat_cols)

    # --- deterministic parameter init ---
    key = jax.random.PRNGKey(0)
    keys = jax.random.split(key, 8)
    emb_tables = []
    for i, c in enumerate(cat_cols):
        emb_tables.append(
            0.1 * jax.random.normal(keys[i], (cat_unique[c], emb_dims[i]), jnp.float32)
        )
    params = {
        "emb_tables": emb_tables,
        # stored pre-transposed relative to torch.nn.Linear (y = x @ W + b)
        "w_num": 0.1 * jax.random.normal(keys[3], (num_dim, num_dim), jnp.float32),
        "b_num": 0.1 * jax.random.normal(keys[4], (1, num_dim), jnp.float32),
        "w_out": 0.1 * jax.random.normal(
            keys[5], (cat_out_dim + num_dim, feature_dim), jnp.float32),
        "b_out": 0.1 * jax.random.normal(keys[6], (1, feature_dim), jnp.float32),
    }

    # --- deterministic example input: (batch, seq, cat_len + num_dim) ---
    batch, seq = 2, 8
    kc, kn = jax.random.split(keys[7])
    cat_ids = jnp.stack(
        [jax.random.randint(jax.random.fold_in(kc, i), (batch, seq), 0, cat_unique[c])
         for i, c in enumerate(cat_cols)],
        axis=-1,
    ).astype(jnp.float32)
    num_feats = jax.random.normal(kn, (batch, seq, num_dim), jnp.float32)
    x = jnp.concatenate([cat_ids, num_feats], axis=-1)   # (2, 8, 19)

    ref = _reference_forward(x, params, cat_cols, num_dim, feature_dim)

    # default path: bf16 MXU compute (looser tolerance, per review)
    out = feature_embedder_forward(x, params, cat_cols, num_dim, feature_dim)
    out = jax.block_until_ready(out)
    assert out.shape == (batch, seq, feature_dim)
    assert jnp.allclose(out, ref, atol=2e-2, rtol=2e-2), "bf16 path mismatch"

    # f32 compute path: exact check
    out_f32 = feature_embedder_forward(x, params, cat_cols, num_dim, feature_dim,
                                       compute_dtype=jnp.float32)
    out_f32 = jax.block_until_ready(out_f32)
    assert jnp.allclose(out_f32, ref, atol=1e-4, rtol=1e-4), "f32 path mismatch"

    print("KERNEL_OK")
</pallas_src>

<mosaic_0001>
module attributes {stable_mosaic.version = 11 : i64} {
  func.func @kernel(%arg0: i32, %arg1: memref<8x3xi32, #tpu.memory_space<vmem>>, %arg2: memref<8x16xbf16, #tpu.memory_space<vmem>>, %arg3: memref<128x128xbf16, #tpu.memory_space<vmem>>, %arg4: memref<16x128xbf16, #tpu.memory_space<vmem>>, %arg5: memref<1x128xf32, #tpu.memory_space<vmem>>, %arg6: memref<8x128xf32, #tpu.memory_space<vmem>>) attributes {dimension_semantics = [#tpu.dimension_semantics<parallel>], iteration_bounds = array<i64: 2>, scalar_prefetch = 0 : i64, scratch_operands = 0 : i64, tpu.core_type = #tpu.core_type<tc>, window_params = [{transform_indices = @transform_0, window_bounds = array<i64: 8, 3>}, {transform_indices = @transform_1, window_bounds = array<i64: 8, 16>}, {pipeline_mode = #tpu.pipeline_mode<synchronous>, transform_indices = @transform_2, window_bounds = array<i64: 128, 128>}, {pipeline_mode = #tpu.pipeline_mode<synchronous>, transform_indices = @transform_3, window_bounds = array<i64: 16, 128>}, {pipeline_mode = #tpu.pipeline_mode<synchronous>, transform_indices = @transform_4, window_bounds = array<i64: 1, 128>}, {transform_indices = @transform_5, window_bounds = array<i64: 8, 128>}]} {
    %c0 = arith.constant 0 : index
    %c0_0 = arith.constant 0 : index
    %0 = vector.load %arg1[%c0, %c0_0] : memref<8x3xi32, #tpu.memory_space<vmem>>, vector<8x3xi32>
    %1 = tpu.iota {dimensions = array<i32: 1>} : vector<8x128xi32>
    %2 = vector.extract_strided_slice %0 {offsets = [0, 0], sizes = [8, 1], strides = [1, 1]} : vector<8x3xi32> to vector<8x1xi32>
    %3 = vector.broadcast %2 : vector<8x1xi32> to vector<8x128xi32>
    %4 = arith.cmpi eq, %1, %3 : vector<8x128xi32>
    %5 = vector.extract_strided_slice %0 {offsets = [0, 1], sizes = [8, 1], strides = [1, 1]} : vector<8x3xi32> to vector<8x1xi32>
    %6 = vector.broadcast %5 : vector<8x1xi32> to vector<8x128xi32>
    %7 = arith.cmpi eq, %1, %6 : vector<8x128xi32>
    %8 = arith.ori %4, %7 : vector<8x128xi1>
    %9 = vector.extract_strided_slice %0 {offsets = [0, 2], sizes = [8, 1], strides = [1, 1]} : vector<8x3xi32> to vector<8x1xi32>
    %10 = vector.broadcast %9 : vector<8x1xi32> to vector<8x128xi32>
    %11 = arith.cmpi eq, %1, %10 : vector<8x128xi32>
    %12 = arith.ori %8, %11 : vector<8x128xi1>
    %13 = arith.extui %12 : vector<8x128xi1> to vector<8x128xi32>
    %14 = arith.sitofp %13 : vector<8x128xi32> to vector<8x128xf32>
    %15 = arith.truncf %14 : vector<8x128xf32> to vector<8x128xbf16>
    %c0_1 = arith.constant 0 : index
    %c0_2 = arith.constant 0 : index
    %16 = vector.load %arg3[%c0_1, %c0_2] : memref<128x128xbf16, #tpu.memory_space<vmem>>, vector<128x128xbf16>
    %cst = arith.constant dense<0.000000e+00> : vector<8x128xf32>
    %17 = tpu.matmul %15, %16, %cst {dimension_numbers = #tpu.dot_dimension_numbers<[1], [0], [0], [1], [0, 0, 1, 1], [], []>} : vector<8x128xbf16>, vector<128x128xbf16>, vector<8x128xf32> -> vector<8x128xf32>
    %c0_3 = arith.constant 0 : index
    %c0_4 = arith.constant 0 : index
    %18 = vector.load %arg2[%c0_3, %c0_4] : memref<8x16xbf16, #tpu.memory_space<vmem>>, vector<8x16xbf16>
    %c0_5 = arith.constant 0 : index
    %c0_6 = arith.constant 0 : index
    %19 = vector.load %arg4[%c0_5, %c0_6] : memref<16x128xbf16, #tpu.memory_space<vmem>>, vector<16x128xbf16>
    %cst_7 = arith.constant dense<0.000000e+00> : vector<8x128xf32>
    %20 = tpu.matmul %18, %19, %cst_7 {dimension_numbers = #tpu.dot_dimension_numbers<[1], [0], [0], [1], [0, 0, 1, 1], [], []>} : vector<8x16xbf16>, vector<16x128xbf16>, vector<8x128xf32> -> vector<8x128xf32>
    %21 = arith.addf %17, %20 : vector<8x128xf32>
    %c0_8 = arith.constant 0 : index
    %c0_9 = arith.constant 0 : index
    %22 = vector.load %arg5[%c0_8, %c0_9] : memref<1x128xf32, #tpu.memory_space<vmem>>, vector<1x128xf32>
    %23 = vector.broadcast %22 : vector<1x128xf32> to vector<8x128xf32>
    %24 = arith.addf %21, %23 : vector<8x128xf32>
    %c0_10 = arith.constant 0 : index
    %c0_11 = arith.constant 0 : index
    %25 = vector.load %arg6[%c0_10, %c0_11] : memref<8x128xf32, #tpu.memory_space<vmem>>, vector<8x128xf32>
    tpu.vector_store %arg6[%c0_10, %c0_11], %24 {strides = array<i32>} : memref<8x128xf32, #tpu.memory_space<vmem>>, vector<8x128xf32>,
    return
  }
  func.func @transform_0(%arg0: i32) -> (i32, i32) {
    %c0_i32 = arith.constant 0 : i32
    %c0_i32_0 = arith.constant 0 : i32
    return %arg0, %c0_i32 : i32, i32
  }
  func.func @transform_1(%arg0: i32) -> (i32, i32) {
    %c0_i32 = arith.constant 0 : i32
    %c0_i32_0 = arith.constant 0 : i32
    return %arg0, %c0_i32 : i32, i32
  }
  func.func @transform_2(%arg0: i32) -> (i32, i32) {
    %c0_i32 = arith.constant 0 : i32
    %c0_i32_0 = arith.constant 0 : i32
    %c0_i32_1 = arith.constant 0 : i32
    return %c0_i32, %c0_i32_0 : i32, i32
  }
  func.func @transform_3(%arg0: i32) -> (i32, i32) {
    %c0_i32 = arith.constant 0 : i32
    %c0_i32_0 = arith.constant 0 : i32
    %c0_i32_1 = arith.constant 0 : i32
    return %c0_i32, %c0_i32_0 : i32, i32
  }
  func.func @transform_4(%arg0: i32) -> (i32, i32) {
    %c0_i32 = arith.constant 0 : i32
    %c0_i32_0 = arith.constant 0 : i32
    %c0_i32_1 = arith.constant 0 : i32
    return %c0_i32, %c0_i32_0 : i32, i32
  }
  func.func @transform_5(%arg0: i32) -> (i32, i32) {
    %c0_i32 = arith.constant 0 : i32
    %c0_i32_0 = arith.constant 0 : i32
    return %arg0, %c0_i32 : i32, i32
  }
}

module attributes {stable_mosaic.version = 11 : i64} {
  func.func @kernel(%arg0: i32, %arg1: memref<8x3xi32, #tpu.memory_space<vmem>>, %arg2: memref<8x16xbf16, #tpu.memory_space<vmem>>, %arg3: memref<128x128xbf16, #tpu.memory_space<vmem>>, %arg4: memref<16x128xbf16, #tpu.memory_space<vmem>>, %arg5: memref<1x128xf32, #tpu.memory_space<vmem>>, %arg6: memref<8x128xf32, #tpu.memory_space<vmem>>) attributes {dimension_semantics = [#tpu.dimension_semantics<parallel>], iteration_bounds = array<i64: 2>, scalar_prefetch = 0 : i64, scratch_operands = 0 : i64, tpu.core_type = #tpu.core_type<tc>, window_params = [{transform_indices = @transform_0, window_bounds = array<i64: 8, 3>}, {transform_indices = @transform_1, window_bounds = array<i64: 8, 16>}, {pipeline_mode = #tpu.pipeline_mode<synchronous>, transform_indices = @transform_2, window_bounds = array<i64: 128, 128>}, {pipeline_mode = #tpu.pipeline_mode<synchronous>, transform_indices = @transform_3, window_bounds = array<i64: 16, 128>}, {pipeline_mode = #tpu.pipeline_mode<synchronous>, transform_indices = @transform_4, window_bounds = array<i64: 1, 128>}, {transform_indices = @transform_5, window_bounds = array<i64: 8, 128>}]} {
    %c0 = arith.constant 0 : index
    %c0_0 = arith.constant 0 : index
    %0 = vector.load %arg1[%c0, %c0_0] : memref<8x3xi32, #tpu.memory_space<vmem>>, vector<8x3xi32>
    %1 = tpu.iota {dimensions = array<i32: 1>} : vector<8x128xi32>
    %2 = vector.extract_strided_slice %0 {offsets = [0, 0], sizes = [8, 1], strides = [1, 1]} : vector<8x3xi32> to vector<8x1xi32>
    %3 = vector.broadcast %2 : vector<8x1xi32> to vector<8x128xi32>
    %4 = arith.cmpi eq, %1, %3 : vector<8x128xi32>
    %5 = vector.extract_strided_slice %0 {offsets = [0, 1], sizes = [8, 1], strides = [1, 1]} : vector<8x3xi32> to vector<8x1xi32>
    %6 = vector.broadcast %5 : vector<8x1xi32> to vector<8x128xi32>
    %7 = arith.cmpi eq, %1, %6 : vector<8x128xi32>
    %8 = arith.ori %4, %7 : vector<8x128xi1>
    %9 = vector.extract_strided_slice %0 {offsets = [0, 2], sizes = [8, 1], strides = [1, 1]} : vector<8x3xi32> to vector<8x1xi32>
    %10 = vector.broadcast %9 : vector<8x1xi32> to vector<8x128xi32>
    %11 = arith.cmpi eq, %1, %10 : vector<8x128xi32>
    %12 = arith.ori %8, %11 : vector<8x128xi1>
    %13 = arith.extui %12 : vector<8x128xi1> to vector<8x128xi32>
    %14 = arith.sitofp %13 : vector<8x128xi32> to vector<8x128xf32>
    %15 = arith.truncf %14 : vector<8x128xf32> to vector<8x128xbf16>
    %c0_1 = arith.constant 0 : index
    %c0_2 = arith.constant 0 : index
    %16 = vector.load %arg3[%c0_1, %c0_2] : memref<128x128xbf16, #tpu.memory_space<vmem>>, vector<128x128xbf16>
    %cst = arith.constant dense<0.000000e+00> : vector<8x128xf32>
    %17 = tpu.matmul %15, %16, %cst {dimension_numbers = #tpu.dot_dimension_numbers<[1], [0], [0], [1], [0, 0, 1, 1], [], []>} : vector<8x128xbf16>, vector<128x128xbf16>, vector<8x128xf32> -> vector<8x128xf32>
    %c0_3 = arith.constant 0 : index
    %c0_4 = arith.constant 0 : index
    %18 = vector.load %arg2[%c0_3, %c0_4] : memref<8x16xbf16, #tpu.memory_space<vmem>>, vector<8x16xbf16>
    %c0_5 = arith.constant 0 : index
    %c0_6 = arith.constant 0 : index
    %19 = vector.load %arg4[%c0_5, %c0_6] : memref<16x128xbf16, #tpu.memory_space<vmem>>, vector<16x128xbf16>
    %cst_7 = arith.constant dense<0.000000e+00> : vector<8x128xf32>
    %20 = tpu.matmul %18, %19, %cst_7 {dimension_numbers = #tpu.dot_dimension_numbers<[1], [0], [0], [1], [0, 0, 1, 1], [], []>} : vector<8x16xbf16>, vector<16x128xbf16>, vector<8x128xf32> -> vector<8x128xf32>
    %21 = arith.addf %17, %20 : vector<8x128xf32>
    %c0_8 = arith.constant 0 : index
    %c0_9 = arith.constant 0 : index
    %22 = vector.load %arg5[%c0_8, %c0_9] : memref<1x128xf32, #tpu.memory_space<vmem>>, vector<1x128xf32>
    %23 = vector.broadcast %22 : vector<1x128xf32> to vector<8x128xf32>
    %24 = arith.addf %21, %23 : vector<8x128xf32>
    %c0_10 = arith.constant 0 : index
    %c0_11 = arith.constant 0 : index
    %25 = vector.load %arg6[%c0_10, %c0_11] : memref<8x128xf32, #tpu.memory_space<vmem>>, vector<8x128xf32>
    tpu.vector_store %arg6[%c0_10, %c0_11], %24 {strides = array<i32>} : memref<8x128xf32, #tpu.memory_space<vmem>>, vector<8x128xf32>,
    return
  }
  func.func @transform_0(%arg0: i32) -> (i32, i32) {
    %c0_i32 = arith.constant 0 : i32
    %c0_i32_0 = arith.constant 0 : i32
    return %arg0, %c0_i32 : i32, i32
  }
  func.func @transform_1(%arg0: i32) -> (i32, i32) {
    %c0_i32 = arith.constant 0 : i32
    %c0_i32_0 = arith.constant 0 : i32
    return %arg0, %c0_i32 : i32, i32
  }
  func.func @transform_2(%arg0: i32) -> (i32, i32) {
    %c0_i32 = arith.constant 0 : i32
    %c0_i32_0 = arith.constant 0 : i32
    %c0_i32_1 = arith.constant 0 : i32
    return %c0_i32, %c0_i32_0 : i32, i32
  }
  func.func @transform_3(%arg0: i32) -> (i32, i32) {
    %c0_i32 = arith.constant 0 : i32
    %c0_i32_0 = arith.constant 0 : i32
    %c0_i32_1 = arith.constant 0 : i32
    return %c0_i32, %c0_i32_0 : i32, i32
  }
  func.func @transform_4(%arg0: i32) -> (i32, i32) {
    %c0_i32 = arith.constant 0 : i32
    %c0_i32_0 = arith.constant 0 : i32
    %c0_i32_1 = arith.constant 0 : i32
    return %c0_i32, %c0_i32_0 : i32, i32
  }
  func.func @transform_5(%arg0: i32) -> (i32, i32) {
    %c0_i32 = arith.constant 0 : i32
    %c0_i32_0 = arith.constant 0 : i32
    return %arg0, %c0_i32 : i32, i32
  }
}

</mosaic_0001>

<llo_original>
// kernel: tpu_custom_call.1
$region0: #{tpu_custom_call.1}
  #allocation0 [shape = 'u32[]', space=smem, size = 0x4, offset = 0x4, fixed_abs, tag = 'smem constant byte address 0x4 - core index']
  #allocation1 [shape = 'u32[144,128]{1,0:T(1,128)}', space=vmem, size = 0x12000, scoped, tag = 'internal scratch']
  %s0 = inlined_call_operand.vmem [shape: s32[16,3], index: 0, kind: input, shape index: {}]
  %s1 = inlined_call_operand.vmem [shape: bf16[16,16], index: 1, kind: input, shape index: {}]
  %s2 = inlined_call_operand.hbm [shape: bf16[128,128], index: 2, kind: input, shape index: {}]
  %s3 = inlined_call_operand.vmem [shape: bf16[16,128], index: 3, kind: input, shape index: {}]
  %s4 = inlined_call_operand.vmem [shape: f32[1,128], index: 4, kind: input, shape index: {}]
  %s5 = inlined_call_operand.hbm [shape: f32[16,128], index: 5, kind: output, shape index: {}]
  %s6 = sld [smem:[#allocation0]]
  $region57: #{tpu_custom_call.1} parent=0
    _
  %s8 = ssub.s32 1, %s6
  %s9 = scalar_select 0, %s8, %s6
  $region1: #{tpu_custom_call.1} parent=0
    #allocation2 [shape = 'u8[32768]{0}', space=vmem, size = 0x8000, scoped, tag = 'input window, operand 2, single buffered']
    #allocation3 [shape = 's32[2]{0}', space=sflag, size = 0x8, scoped, tag = 'scoped memory for tpu_custom_call.1']
    #allocation4 [shape = 's32[2]{0}', space=sflag, size = 0x8, scoped, tag = 'scoped memory for tpu_custom_call.1']
    #allocation5 [shape = 'u8[8192]{0}', space=vmem, size = 0x2000, scoped, tag = 'output window, operand 0']
    %10 = vsyncpa [#allocation3], 0
    %11 = vsyncpa [#allocation4], 0
    %s12 = scalar_lea.sflag [#allocation4], 1
    %13 = vsyncpa %s12, 0
    loop: start=0, step=1, limit=4
    $region2: #{tpu_custom_call.1} parent=1 // loop_pre_header
      _
    $region3: #{tpu_custom_call.1} parent=1 // loop_header
      %s15 = sphi 0, %s19
      %p16 = scmp.ge.s32.totalorder %s15, 4
      %s25 = sphi 0, %s27
      %s28 = sphi 0, %s25
      %s29 = sphi 0, %s28
      %s45 = sphi 0, %s29
      %s51 = sphi 0, %s53
      %s54 = sphi 0, %s51
      %s55 = sphi 0, %s54
      %s71 = sphi 0, %s55
      %s75 = sphi 0, %s75
      %s77 = sphi 0, %s75
      %s78 = sphi 0, %s77
      %s92 = sphi 0, %s78
      %s96 = sphi 0, %s96
      %s98 = sphi 0, %s96
      %s99 = sphi 0, %s98
      %s113 = sphi 0, %s99
      %s117 = sphi 0, %s117
      %s119 = sphi 0, %s117
      %s120 = sphi 0, %s119
      %s134 = sphi 0, %s120
      %s140 = sphi 0, %s142
      %s143 = sphi 0, %s140
      %s144 = sphi 0, %s143
      %s160 = sphi 0, %s144
    $region4: #{tpu_custom_call.1} parent=1 // loop_header_branch
      %18 = sbr.rel (%p16) target = $region8
    $region5: #{tpu_custom_call.1} parent=1 // loop_body
      %s20 = ssub.s32 %s15, 1
      %s21 = ssub.s32 %s15, 2
      %s22 = sadd.s32 %s15, 1
      %s23 = ssub.s32 %s15, %s22
      %p24 = scmp.eq.s32.totalorder %s23, 0
      %s26 = sadd.s32 %s25, 1
      %s27 = scalar_select %p24, %s25, %s26
      %p30 = pneg %p24
      %p31 = scmp.eq.s32.totalorder %s15, 1
      %p32 = por %p30, %p31
      %p33 = scmp.ne.s32.totalorder %s25, %s28
      %p34 = scmp.eq.s32.totalorder %s15, 0
      %p35 = por %p33, %p34
      %p36 = scmp.ne.s32.totalorder %s25, %s28
      %p37 = scmp.eq.s32.totalorder %s20, 1
      %p38 = por %p36, %p37
      %p39 = scmp.ne.s32.totalorder %s28, %s29
      %p40 = scmp.eq.s32.totalorder %s20, 0
      %p41 = por %p39, %p40
      %p42 = scmp.ne.s32.totalorder %s28, %s29
      %p43 = scmp.eq.s32.totalorder %s21, 1
      %p44 = por %p42, %p43
      %p46 = scmp.ne.s32.totalorder %s29, %s45
      %p47 = scmp.eq.s32.totalorder %s21, 0
      %p48 = por %p46, %p47
      %s49 = ssub.s32 %s15, %s22
      %p50 = scmp.eq.s32.totalorder %s49, 0
      %s52 = sadd.s32 %s51, 1
      %s53 = scalar_select %p50, %s51, %s52
      %p56 = pneg %p50
      %p57 = scmp.eq.s32.totalorder %s15, 1
      %p58 = por %p56, %p57
      %p59 = scmp.ne.s32.totalorder %s51, %s54
      %p60 = scmp.eq.s32.totalorder %s15, 0
      %p61 = por %p59, %p60
      %p62 = scmp.ne.s32.totalorder %s51, %s54
      %p63 = scmp.eq.s32.totalorder %s20, 1
      %p64 = por %p62, %p63
      %p65 = scmp.ne.s32.totalorder %s54, %s55
      %p66 = scmp.eq.s32.totalorder %s20, 0
      %p67 = por %p65, %p66
      %p68 = scmp.ne.s32.totalorder %s54, %s55
      %p69 = scmp.eq.s32.totalorder %s21, 1
      %p70 = por %p68, %p69
      %p72 = scmp.ne.s32.totalorder %s55, %s71
      %p73 = scmp.eq.s32.totalorder %s21, 0
      %p74 = por %p72, %p73
      %s76 = sadd.s32 %s75, 1
      %p79 = scmp.eq.s32.totalorder %s15, 1
      %p80 = scmp.ne.s32.totalorder %s75, %s77
      %p81 = scmp.eq.s32.totalorder %s15, 0
      %p82 = por %p80, %p81
      %p83 = scmp.ne.s32.totalorder %s75, %s77
      %p84 = scmp.eq.s32.totalorder %s20, 1
      %p85 = por %p83, %p84
      %p86 = scmp.ne.s32.totalorder %s77, %s78
      %p87 = scmp.eq.s32.totalorder %s20, 0
      %p88 = por %p86, %p87
      %p89 = scmp.ne.s32.totalorder %s77, %s78
      %p90 = scmp.eq.s32.totalorder %s21, 1
      %p91 = por %p89, %p90
      %p93 = scmp.ne.s32.totalorder %s78, %s92
      %p94 = scmp.eq.s32.totalorder %s21, 0
      %p95 = por %p93, %p94
      %s97 = sadd.s32 %s96, 1
      %p100 = scmp.eq.s32.totalorder %s15, 1
      %p101 = scmp.ne.s32.totalorder %s96, %s98
      %p102 = scmp.eq.s32.totalorder %s15, 0
      %p103 = por %p101, %p102
      %p104 = scmp.ne.s32.totalorder %s96, %s98
      %p105 = scmp.eq.s32.totalorder %s20, 1
      %p106 = por %p104, %p105
      %p107 = scmp.ne.s32.totalorder %s98, %s99
      %p108 = scmp.eq.s32.totalorder %s20, 0
      %p109 = por %p107, %p108
      %p110 = scmp.ne.s32.totalorder %s98, %s99
      %p111 = scmp.eq.s32.totalorder %s21, 1
      %p112 = por %p110, %p111
      %p114 = scmp.ne.s32.totalorder %s99, %s113
      %p115 = scmp.eq.s32.totalorder %s21, 0
      %p116 = por %p114, %p115
      %s118 = sadd.s32 %s117, 1
      %p121 = scmp.eq.s32.totalorder %s15, 1
      %p122 = scmp.ne.s32.totalorder %s117, %s119
      %p123 = scmp.eq.s32.totalorder %s15, 0
      %p124 = por %p122, %p123
      %p125 = scmp.ne.s32.totalorder %s117, %s119
      %p126 = scmp.eq.s32.totalorder %s20, 1
      %p127 = por %p125, %p126
      %p128 = scmp.ne.s32.totalorder %s119, %s120
      %p129 = scmp.eq.s32.totalorder %s20, 0
      %p130 = por %p128, %p129
      %p131 = scmp.ne.s32.totalorder %s119, %s120
      %p132 = scmp.eq.s32.totalorder %s21, 1
      %p133 = por %p131, %p132
      %p135 = scmp.ne.s32.totalorder %s120, %s134
      %p136 = scmp.eq.s32.totalorder %s21, 0
      %p137 = por %p135, %p136
      %s138 = ssub.s32 %s15, %s22
      %p139 = scmp.eq.s32.totalorder %s138, 0
      %s141 = sadd.s32 %s140, 1
      %s142 = scalar_select %p139, %s140, %s141
      %p145 = pneg %p139
      %p146 = scmp.eq.s32.totalorder %s15, 1
      %p147 = por %p145, %p146
      %p148 = scmp.ne.s32.totalorder %s140, %s143
      %p149 = scmp.eq.s32.totalorder %s15, 0
      %p150 = por %p148, %p149
      %p151 = scmp.ne.s32.totalorder %s140, %s143
      %p152 = scmp.eq.s32.totalorder %s20, 1
      %p153 = por %p151, %p152
      %p154 = scmp.ne.s32.totalorder %s143, %s144
      %p155 = scmp.eq.s32.totalorder %s20, 0
      %p156 = por %p154, %p155
      %p157 = scmp.ne.s32.totalorder %s143, %s144
      %p158 = scmp.eq.s32.totalorder %s21, 1
      %p159 = por %p157, %p158
      %p161 = scmp.ne.s32.totalorder %s144, %s160
      %p162 = scmp.eq.s32.totalorder %s21, 0
      %p163 = por %p161, %p162
      %p164 = scmp.le.s32.totalorder 1, %s15
      %p165 = scmp.lt.s32.totalorder %s15, 3
      %p166 = pnand %p164, %p165
      %p167 = pneg %p166
      // Predicated region
      $region9: #{tpu_custom_call.1} parent=5 // pred_check
        _
      $region10: #{tpu_custom_call.1} parent=5 // pred_check_branch
        %169 = sbr.rel (%p166) target = $region12
      $region11: #{tpu_custom_call.1} parent=5 // pred_region
        %s170 = ssub.s32 %s15, 1
        // Predicated region
        $region13: #{tpu_custom_call.1} parent=11 // pred_check
          %p171 = pneg %p88
        $region14: #{tpu_custom_call.1} parent=11 // pred_check_branch
          %173 = sbr.rel (%p171) target = $region16
        $region15: #{tpu_custom_call.1} parent=11 // pred_region
          %s175 = ssub.s32 1024, 1024
          %176 = vsyncadd [#allocation3], %s175
          %s177 = sshll.u32 [#allocation2], 4
          %s178 = int_to_ptr.vmem [resolvable:$true] %s177
          %183 = dma.hbm_to_vmem [thread:$0]  %s2, 1024, %s178, [#allocation3], 64, 64, 4
        $region16: #{tpu_custom_call.1} parent=11 // pred_fallthru
          _
        // Predicated region
        $region17: #{tpu_custom_call.1} parent=11 // pred_check
          %p184 = pneg %p109
        $region18: #{tpu_custom_call.1} parent=11 // pred_check_branch
          %186 = sbr.rel (%p184) target = $region20
        $region19: #{tpu_custom_call.1} parent=11 // pred_region
          _
        $region20: #{tpu_custom_call.1} parent=11 // pred_fallthru
          _
        // Predicated region
        $region21: #{tpu_custom_call.1} parent=11 // pred_check
          %p187 = pneg %p130
        $region22: #{tpu_custom_call.1} parent=11 // pred_check_branch
          %189 = sbr.rel (%p187) target = $region24
        $region23: #{tpu_custom_call.1} parent=11 // pred_region
          _
        $region24: #{tpu_custom_call.1} parent=11 // pred_fallthru
          _
      $region12: #{tpu_custom_call.1} parent=5 // pred_fallthru
        _
      %p190 = scmp.lt.s32.totalorder %s15, 2
      // Predicated region
      $region25: #{tpu_custom_call.1} parent=5 // pred_check
        %p191 = pneg %p190
      $region26: #{tpu_custom_call.1} parent=5 // pred_check_branch
        %193 = sbr.rel (%p191) target = $region28
      $region27: #{tpu_custom_call.1} parent=5 // pred_region
        // Predicated region
        $region29: #{tpu_custom_call.1} parent=27 // pred_check
          %p194 = pneg %p35
        $region30: #{tpu_custom_call.1} parent=27 // pred_check_branch
          %196 = sbr.rel (%p194) target = $region32
        $region31: #{tpu_custom_call.1} parent=27 // pred_region
          %p197 = scmp.lt.s32.totalorder %s15, 1
          %s198 = scalar_select %p197, %s15, 1
          %s199 = smul.addr %s198, 8
          %s200 = scalar_lea.vmem %s0, %s199
        $region32: #{tpu_custom_call.1} parent=27 // pred_fallthru
          _
        // Predicated region
        $region33: #{tpu_custom_call.1} parent=27 // pred_check
          %p201 = pneg %p61
        $region34: #{tpu_custom_call.1} parent=27 // pred_check_branch
          %203 = sbr.rel (%p201) target = $region36
        $region35: #{tpu_custom_call.1} parent=27 // pred_region
          %p204 = scmp.lt.s32.totalorder %s15, 1
          %s205 = scalar_select %p204, %s15, 1
          %s206 = smul.addr %s205, 4
          %s207 = scalar_lea.vmem %s1, %s206
        $region36: #{tpu_custom_call.1} parent=27 // pred_fallthru
          _
      $region28: #{tpu_custom_call.1} parent=5 // pred_fallthru
        _
      %p208 = scmp.le.s32.totalorder 1, %s15
      %p209 = scmp.lt.s32.totalorder %s15, 3
      %p210 = pnand %p208, %p209
      %p211 = pneg %p210
      // Predicated region
      $region37: #{tpu_custom_call.1} parent=5 // pred_check
        _
      $region38: #{tpu_custom_call.1} parent=5 // pred_check_branch
        %213 = sbr.rel (%p210) target = $region40
      $region39: #{tpu_custom_call.1} parent=5 // pred_region
        %s214 = ssub.s32 %s15, 1
        // Predicated region
        $region41: #{tpu_custom_call.1} parent=39 // pred_check
          %p215 = pneg %p88
        $region42: #{tpu_custom_call.1} parent=39 // pred_check_branch
          %217 = sbr.rel (%p215) target = $region44
        $region43: #{tpu_custom_call.1} parent=39 // pred_region
          %218 = dma.done [#allocation3], 1024
        $region44: #{tpu_custom_call.1} parent=39 // pred_fallthru
          _
        %p219 = scmp.lt.s32.totalorder %s20, 1
        %s220 = scalar_select %p219, %s20, 1
        %s221 = smul.addr %s220, 8
        %s222 = scalar_lea.vmem %s0, %s221
        %p223 = pneg %p41
        %p224 = pneg %p38
        %p225 = scmp.lt.s32.totalorder %s20, 1
        %s226 = scalar_select %p225, %s20, 1
        %s227 = smul.addr %s226, 4
        %s228 = scalar_lea.vmem %s1, %s227
        %p229 = pneg %p67
        %p230 = pneg %p64
        %p231 = pneg %p88
        %p232 = pneg %p85
        %p233 = pneg %p109
        %p234 = pneg %p106
        %p235 = pneg %p130
        %p236 = pneg %p127
        %p237 = pneg %p156
        %p238 = pneg %p153
        %s239 = sand.u32 %s143, 1
        %s240 = scalar_lea.sflag [#allocation4], %s239
        %s241 = sand.u32 %s143, 1
        %s242 = smul.addr %s241, 8
        %s243 = scalar_lea.vmem [#allocation5], %s242
        %p244 = scmp.lt.s32.totalorder %s20, 1
        %s245 = scalar_select %p244, %s20, 1
        %s246 = smul.addr %s245, 8
        %s247 = scalar_lea.vmem %s0, %s246
        %p248 = scmp.lt.s32.totalorder %s20, 1
        %s249 = scalar_select %p248, %s20, 1
        %s250 = smul.addr %s249, 4
        %s251 = scalar_lea.vmem %s1, %s250
        %v253 = vld [vmem:[%s247] sm:$0xff]
        %v254 = vlaneseq
        %v255 = vand.u32 %v254, 127
        %256 = vset.pattern.permute.xlu0 0
        %257 = vperm.xlu0 %256, %v253
        %v258 = vpop.permute.xlu0 %257
        %vm259 = vcmp.eq.s32.totalorder %v255, %v258
        %260 = vset.pattern.permute.xlu0 1
        %261 = vperm.xlu0 %260, %v253
        %v262 = vpop.permute.xlu0 %261
        %vm263 = vcmp.eq.s32.totalorder %v255, %v262
        %vm264 = vmor %vm259, %vm263
        %265 = vset.pattern.permute.xlu0 2
        %266 = vperm.xlu0 %265, %v253
        %v267 = vpop.permute.xlu0 %266
        %vm268 = vcmp.eq.s32.totalorder %v255, %v267
        %vm269 = vmor %vm264, %vm268
        %v270 = vsel %vm269, 1, 0
        %v271 = vcvt.s32.f32 %v270
        %v272 = vpack.c.bf16 %v271, %v271
        %v273 = vld [vmem:[#allocation2] sm:$0xf]
        %v274 = vld [vmem:[#allocation2 + $0x4] sm:$0xf]
        %v275 = vld [vmem:[#allocation2 + $0x8] sm:$0xf]
        %v276 = vld [vmem:[#allocation2 + $0xc] sm:$0xf]
        %v277 = vld [vmem:[#allocation2 + $0x10] sm:$0xf]
        %v278 = vld [vmem:[#allocation2 + $0x14] sm:$0xf]
        %v279 = vld [vmem:[#allocation2 + $0x18] sm:$0xf]
        %v280 = vld [vmem:[#allocation2 + $0x1c] sm:$0xf]
        %v281 = vld [vmem:[#allocation2 + $0x20] sm:$0xf]
        %v282 = vld [vmem:[#allocation2 + $0x24] sm:$0xf]
        %v283 = vld [vmem:[#allocation2 + $0x28] sm:$0xf]
        %v284 = vld [vmem:[#allocation2 + $0x2c] sm:$0xf]
        %v285 = vld [vmem:[#allocation2 + $0x30] sm:$0xf]
        %v286 = vld [vmem:[#allocation2 + $0x34] sm:$0xf]
        %v287 = vld [vmem:[#allocation2 + $0x38] sm:$0xf]
        %v288 = vld [vmem:[#allocation2 + $0x3c] sm:$0xf]
        %v289 = vld [vmem:[%s251] sm:$0xf]
        %v290 = vld [vmem:[%s3] sm:$0xf]
        %v291 = vld [vmem:[%s3 + $0x4] sm:$0xf]
        %v294 = vunpack.c.l.b16 %v290
        %v295 = vunpack.c.l.b16 %v291
        %v296 = vpack.c.b16 %v295, %v294
        %vm298 = vcmask 130048
        %v300 = vsel %vm298, %v289, 0
        %302 = vmatprep.subr.bf16.mxu0 0
        %303 = vmatpush1.bf16.msra.mxu0 %v296
        %304 = vmatprep.subr.bf16.mxu0 0
        %305 = vmatpush1.bf16.msra.mxu0 0
        %306 = vmatprep.subr.bf16.mxu0 0
        %307 = vmatpush1.bf16.msra.mxu0 0
        %308 = vmatprep.subr.bf16.mxu0 0
        %309 = vmatpush1.bf16.msra.mxu0 0
        %310 = vmatprep.subr.bf16.mxu0 0
        %311 = vmatpush1.bf16.msra.mxu0 0
        %312 = vmatprep.subr.bf16.mxu0 0
        %313 = vmatpush1.bf16.msra.mxu0 0
        %314 = vmatprep.subr.bf16.mxu0 0
        %315 = vmatpush1.bf16.msra.mxu0 0
        %316 = vmatprep.subr.bf16.mxu0 0
        %317 = vmatpush1.bf16.msra.mxu0 0
        %318 = vmatprep.subr.bf16.mxu0 0
        %319 = vmatpush1.bf16.msra.mxu0 0
        %320 = vmatprep.subr.bf16.mxu0 0
        %321 = vmatpush1.bf16.msra.mxu0 0
        %322 = vmatprep.subr.bf16.mxu0 0
        %323 = vmatpush1.bf16.msra.mxu0 0
        %324 = vmatprep.subr.bf16.mxu0 0
        %325 = vmatpush1.bf16.msra.mxu0 0
        %326 = vmatprep.subr.bf16.mxu0 0
        %327 = vmatpush1.bf16.msra.mxu0 0
        %328 = vmatprep.subr.bf16.mxu0 0
        %329 = vmatpush1.bf16.msra.mxu0 0
        %330 = vmatprep.subr.bf16.mxu0 0
        %331 = vmatpush1.bf16.msra.mxu0 0
        %332 = vmatprep.subr.bf16.mxu0 0
        %333 = vmatpush1.bf16.msra.mxu0 0
        %334 = vmatprep.mubr.bf16.mxu0 0
        %335 = vmatmul.mubr.bf16.gmra.mrb[0].mxu0 %v300
        %v336 = vpop.f32.mrb[0].mxu0
        %v337 = vadd.f32 0.0, %v336
        %v338 = vpop.f32.mrb[0].mxu0
        %v339 = vpop.f32.mrb[0].mxu0
        %v340 = vpop.f32.mrb[0].mxu0
        %341 = vdwg.mxu0
        %v358 = vunpack.c.l.b16 %v273
        %v359 = vunpack.c.l.b16 %v274
        %v360 = vunpack.c.l.b16 %v275
        %v361 = vunpack.c.l.b16 %v276
        %v362 = vunpack.c.l.b16 %v277
        %v363 = vunpack.c.l.b16 %v278
        %v364 = vunpack.c.l.b16 %v279
        %v365 = vunpack.c.l.b16 %v280
        %v366 = vunpack.c.l.b16 %v281
        %v367 = vunpack.c.l.b16 %v282
        %v368 = vunpack.c.l.b16 %v283
        %v369 = vunpack.c.l.b16 %v284
        %v370 = vunpack.c.l.b16 %v285
        %v371 = vunpack.c.l.b16 %v286
        %v372 = vunpack.c.l.b16 %v287
        %v373 = vunpack.c.l.b16 %v288
        %v374 = vpack.c.b16 %v359, %v358
        %v375 = vpack.c.b16 %v361, %v360
        %v376 = vpack.c.b16 %v363, %v362
        %v377 = vpack.c.b16 %v365, %v364
        %v378 = vpack.c.b16 %v367, %v366
        %v379 = vpack.c.b16 %v369, %v368
        %v380 = vpack.c.b16 %v371, %v370
        %v381 = vpack.c.b16 %v373, %v372
        %390 = vmatprep.subr.bf16.mxu0 0
        %391 = vmatpush1.bf16.msra.mxu0 %v374
        %392 = vmatprep.subr.bf16.mxu0 0
        %393 = vmatpush1.bf16.msra.mxu0 %v375
        %394 = vmatprep.subr.bf16.mxu0 0
        %395 = vmatpush1.bf16.msra.mxu0 %v376
        %396 = vmatprep.subr.bf16.mxu0 0
        %397 = vmatpush1.bf16.msra.mxu0 %v377
        %398 = vmatprep.subr.bf16.mxu0 0
        %399 = vmatpush1.bf16.msra.mxu0 %v378
        %400 = vmatprep.subr.bf16.mxu0 0
        %401 = vmatpush1.bf16.msra.mxu0 %v379
        %402 = vmatprep.subr.bf16.mxu0 0
        %403 = vmatpush1.bf16.msra.mxu0 %v380
        %404 = vmatprep.subr.bf16.mxu0 0
        %405 = vmatpush1.bf16.msra.mxu0 %v381
        %406 = vmatprep.subr.bf16.mxu0 0
        %407 = vmatpush1.bf16.msra.mxu0 0
        %408 = vmatprep.subr.bf16.mxu0 0
        %409 = vmatpush1.bf16.msra.mxu0 0
        %410 = vmatprep.subr.bf16.mxu0 0
        %411 = vmatpush1.bf16.msra.mxu0 0
        %412 = vmatprep.subr.bf16.mxu0 0
        %413 = vmatpush1.bf16.msra.mxu0 0
        %414 = vmatprep.subr.bf16.mxu0 0
        %415 = vmatpush1.bf16.msra.mxu0 0
        %416 = vmatprep.subr.bf16.mxu0 0
        %417 = vmatpush1.bf16.msra.mxu0 0
        %418 = vmatprep.subr.bf16.mxu0 0
        %419 = vmatpush1.bf16.msra.mxu0 0
        %420 = vmatprep.subr.bf16.mxu0 0
        %421 = vmatpush1.bf16.msra.mxu0 0
        %422 = vmatprep.mubr.bf16.mxu0 0
        %423 = vmatmul.mubr.bf16.gmra.mrb[0].mxu0 %v272
        %v424 = vpop.f32.mrb[0].mxu0
        %v425 = vadd.f32 %v337, %v424
        %v426 = vpop.f32.mrb[0].mxu0
        %v427 = vpop.f32.mrb[0].mxu0
        %v428 = vpop.f32.mrb[0].mxu0
        %429 = vdwg.mxu0
        %v430 = vld [vmem:[%s4] sm:$0x1]
        %v432 = vlaneseq
        %v433 = vshrl.u32 %v432, 7
        %v434 = vsub.s32 0, %v433
        %v435 = vrot.slane %v430, %v434
        %v437 = vadd.f32 %v425, %v435
        %438 = vst [vmem:[%s243] sm:$0xff] %v437
        %s439 = sand.u32 %s143, 1
        %s440 = scalar_lea.sflag [#allocation4], %s439
        %s441 = sand.u32 %s143, 1
        %s442 = smul.addr %s441, 8
        %s443 = scalar_lea.vmem [#allocation5], %s442
        // Predicated region
        $region45: #{tpu_custom_call.1} parent=39 // pred_check
          %p444 = pneg %p153
        $region46: #{tpu_custom_call.1} parent=39 // pred_check_branch
          %446 = sbr.rel (%p444) target = $region48
        $region47: #{tpu_custom_call.1} parent=39 // pred_region
          %s448 = ssub.s32 128, 128
          %449 = vsyncadd %s440, %s448
          %s450 = smul.addr %s20, 128
          %s451 = scalar_lea.hbm %s5, %s450
          %s453 = sshll.u32 %s443, 4
          %s454 = int_to_ptr.vmem [resolvable:$true] %s453
          %456 = dma.vmem_to_hbm [thread:$0]  %s454, 128, %s451, %s440
        $region48: #{tpu_custom_call.1} parent=39 // pred_fallthru
          _
      $region40: #{tpu_custom_call.1} parent=5 // pred_fallthru
        _
      %p457 = scmp.le.s32.totalorder 2, %s15
      // Predicated region
      $region49: #{tpu_custom_call.1} parent=5 // pred_check
        %p458 = pneg %p457
      $region50: #{tpu_custom_call.1} parent=5 // pred_check_branch
        %460 = sbr.rel (%p458) target = $region52
      $region51: #{tpu_custom_call.1} parent=5 // pred_region
        %s461 = ssub.s32 %s15, 2
        // Predicated region
        $region53: #{tpu_custom_call.1} parent=51 // pred_check
          %p462 = pneg %p159
        $region54: #{tpu_custom_call.1} parent=51 // pred_check_branch
          %464 = sbr.rel (%p462) target = $region56
        $region55: #{tpu_custom_call.1} parent=51 // pred_region
          %s465 = sand.u32 %s144, 1
          %s466 = scalar_lea.sflag [#allocation4], %s465
          %s467 = sand.u32 %s144, 1
          %s468 = smul.addr %s467, 8
          %s469 = scalar_lea.vmem [#allocation5], %s468
          %470 = dma.done %s466, 128
        $region56: #{tpu_custom_call.1} parent=51 // pred_fallthru
          _
      $region52: #{tpu_custom_call.1} parent=5 // pred_fallthru
        _
    $region6: #{tpu_custom_call.1} parent=1 // loop_footer
      %s19 = sadd.s32 1, %s15
    $region7: #{tpu_custom_call.1} parent=1 // loop_footer_branch
      %14 = sbr.rel target = $region3
    $region8: #{tpu_custom_call.1} parent=1 // loop_exit
      _
    %471 = vsyncpa [#allocation3], 1
    %s472 = scalar_lea.sflag [#allocation3], 1
    %473 = vsyncpa %s472, 1
    %474 = vsyncpa [#allocation4], 1
    %s475 = scalar_lea.sflag [#allocation4], 1
    %476 = vsyncpa %s475, 1

// kernel: tpu_custom_call.1
$region0: #{tpu_custom_call.1}
  #allocation0 [shape = 'u32[]', space=smem, size = 0x4, offset = 0x4, fixed_abs, tag = 'smem constant byte address 0x4 - core index']
  #allocation1 [shape = 'u32[144,128]{1,0:T(1,128)}', space=vmem, size = 0x12000, scoped, tag = 'internal scratch']
  %s0 = inlined_call_operand.vmem [shape: s32[16,3], index: 0, kind: input, shape index: {}]
  %s1 = inlined_call_operand.vmem [shape: bf16[16,16], index: 1, kind: input, shape index: {}]
  %s2 = inlined_call_operand.hbm [shape: bf16[128,128], index: 2, kind: input, shape index: {}]
  %s3 = inlined_call_operand.vmem [shape: bf16[16,128], index: 3, kind: input, shape index: {}]
  %s4 = inlined_call_operand.vmem [shape: f32[1,128], index: 4, kind: input, shape index: {}]
  %s5 = inlined_call_operand.hbm [shape: f32[16,128], index: 5, kind: output, shape index: {}]
  %s6 = sld [smem:[#allocation0]]
  $region57: #{tpu_custom_call.1} parent=0
    _
  %s8 = ssub.s32 1, %s6
  %s9 = scalar_select 0, %s8, %s6
  $region1: #{tpu_custom_call.1} parent=0
    #allocation2 [shape = 'u8[32768]{0}', space=vmem, size = 0x8000, scoped, tag = 'input window, operand 2, single buffered']
    #allocation3 [shape = 's32[2]{0}', space=sflag, size = 0x8, scoped, tag = 'scoped memory for tpu_custom_call.1']
    #allocation4 [shape = 's32[2]{0}', space=sflag, size = 0x8, scoped, tag = 'scoped memory for tpu_custom_call.1']
    #allocation5 [shape = 'u8[8192]{0}', space=vmem, size = 0x2000, scoped, tag = 'output window, operand 0']
    %10 = vsyncpa [#allocation3], 0
    %11 = vsyncpa [#allocation4], 0
    %s12 = scalar_lea.sflag [#allocation4], 1
    %13 = vsyncpa %s12, 0
    loop: start=0, step=1, limit=4
    $region2: #{tpu_custom_call.1} parent=1 // loop_pre_header
      _
    $region3: #{tpu_custom_call.1} parent=1 // loop_header
      %s15 = sphi 0, %s19
      %p16 = scmp.ge.s32.totalorder %s15, 4
      %s25 = sphi 0, %s27
      %s28 = sphi 0, %s25
      %s29 = sphi 0, %s28
      %s45 = sphi 0, %s29
      %s51 = sphi 0, %s53
      %s54 = sphi 0, %s51
      %s55 = sphi 0, %s54
      %s71 = sphi 0, %s55
      %s75 = sphi 0, %s75
      %s77 = sphi 0, %s75
      %s78 = sphi 0, %s77
      %s92 = sphi 0, %s78
      %s96 = sphi 0, %s96
      %s98 = sphi 0, %s96
      %s99 = sphi 0, %s98
      %s113 = sphi 0, %s99
      %s117 = sphi 0, %s117
      %s119 = sphi 0, %s117
      %s120 = sphi 0, %s119
      %s134 = sphi 0, %s120
      %s140 = sphi 0, %s142
      %s143 = sphi 0, %s140
      %s144 = sphi 0, %s143
      %s160 = sphi 0, %s144
    $region4: #{tpu_custom_call.1} parent=1 // loop_header_branch
      %18 = sbr.rel (%p16) target = $region8
    $region5: #{tpu_custom_call.1} parent=1 // loop_body
      %s20 = ssub.s32 %s15, 1
      %s21 = ssub.s32 %s15, 2
      %s22 = sadd.s32 %s15, 1
      %s23 = ssub.s32 %s15, %s22
      %p24 = scmp.eq.s32.totalorder %s23, 0
      %s26 = sadd.s32 %s25, 1
      %s27 = scalar_select %p24, %s25, %s26
      %p30 = pneg %p24
      %p31 = scmp.eq.s32.totalorder %s15, 1
      %p32 = por %p30, %p31
      %p33 = scmp.ne.s32.totalorder %s25, %s28
      %p34 = scmp.eq.s32.totalorder %s15, 0
      %p35 = por %p33, %p34
      %p36 = scmp.ne.s32.totalorder %s25, %s28
      %p37 = scmp.eq.s32.totalorder %s20, 1
      %p38 = por %p36, %p37
      %p39 = scmp.ne.s32.totalorder %s28, %s29
      %p40 = scmp.eq.s32.totalorder %s20, 0
      %p41 = por %p39, %p40
      %p42 = scmp.ne.s32.totalorder %s28, %s29
      %p43 = scmp.eq.s32.totalorder %s21, 1
      %p44 = por %p42, %p43
      %p46 = scmp.ne.s32.totalorder %s29, %s45
      %p47 = scmp.eq.s32.totalorder %s21, 0
      %p48 = por %p46, %p47
      %s49 = ssub.s32 %s15, %s22
      %p50 = scmp.eq.s32.totalorder %s49, 0
      %s52 = sadd.s32 %s51, 1
      %s53 = scalar_select %p50, %s51, %s52
      %p56 = pneg %p50
      %p57 = scmp.eq.s32.totalorder %s15, 1
      %p58 = por %p56, %p57
      %p59 = scmp.ne.s32.totalorder %s51, %s54
      %p60 = scmp.eq.s32.totalorder %s15, 0
      %p61 = por %p59, %p60
      %p62 = scmp.ne.s32.totalorder %s51, %s54
      %p63 = scmp.eq.s32.totalorder %s20, 1
      %p64 = por %p62, %p63
      %p65 = scmp.ne.s32.totalorder %s54, %s55
      %p66 = scmp.eq.s32.totalorder %s20, 0
      %p67 = por %p65, %p66
      %p68 = scmp.ne.s32.totalorder %s54, %s55
      %p69 = scmp.eq.s32.totalorder %s21, 1
      %p70 = por %p68, %p69
      %p72 = scmp.ne.s32.totalorder %s55, %s71
      %p73 = scmp.eq.s32.totalorder %s21, 0
      %p74 = por %p72, %p73
      %s76 = sadd.s32 %s75, 1
      %p79 = scmp.eq.s32.totalorder %s15, 1
      %p80 = scmp.ne.s32.totalorder %s75, %s77
      %p81 = scmp.eq.s32.totalorder %s15, 0
      %p82 = por %p80, %p81
      %p83 = scmp.ne.s32.totalorder %s75, %s77
      %p84 = scmp.eq.s32.totalorder %s20, 1
      %p85 = por %p83, %p84
      %p86 = scmp.ne.s32.totalorder %s77, %s78
      %p87 = scmp.eq.s32.totalorder %s20, 0
      %p88 = por %p86, %p87
      %p89 = scmp.ne.s32.totalorder %s77, %s78
      %p90 = scmp.eq.s32.totalorder %s21, 1
      %p91 = por %p89, %p90
      %p93 = scmp.ne.s32.totalorder %s78, %s92
      %p94 = scmp.eq.s32.totalorder %s21, 0
      %p95 = por %p93, %p94
      %s97 = sadd.s32 %s96, 1
      %p100 = scmp.eq.s32.totalorder %s15, 1
      %p101 = scmp.ne.s32.totalorder %s96, %s98
      %p102 = scmp.eq.s32.totalorder %s15, 0
      %p103 = por %p101, %p102
      %p104 = scmp.ne.s32.totalorder %s96, %s98
      %p105 = scmp.eq.s32.totalorder %s20, 1
      %p106 = por %p104, %p105
      %p107 = scmp.ne.s32.totalorder %s98, %s99
      %p108 = scmp.eq.s32.totalorder %s20, 0
      %p109 = por %p107, %p108
      %p110 = scmp.ne.s32.totalorder %s98, %s99
      %p111 = scmp.eq.s32.totalorder %s21, 1
      %p112 = por %p110, %p111
      %p114 = scmp.ne.s32.totalorder %s99, %s113
      %p115 = scmp.eq.s32.totalorder %s21, 0
      %p116 = por %p114, %p115
      %s118 = sadd.s32 %s117, 1
      %p121 = scmp.eq.s32.totalorder %s15, 1
      %p122 = scmp.ne.s32.totalorder %s117, %s119
      %p123 = scmp.eq.s32.totalorder %s15, 0
      %p124 = por %p122, %p123
      %p125 = scmp.ne.s32.totalorder %s117, %s119
      %p126 = scmp.eq.s32.totalorder %s20, 1
      %p127 = por %p125, %p126
      %p128 = scmp.ne.s32.totalorder %s119, %s120
      %p129 = scmp.eq.s32.totalorder %s20, 0
      %p130 = por %p128, %p129
      %p131 = scmp.ne.s32.totalorder %s119, %s120
      %p132 = scmp.eq.s32.totalorder %s21, 1
      %p133 = por %p131, %p132
      %p135 = scmp.ne.s32.totalorder %s120, %s134
      %p136 = scmp.eq.s32.totalorder %s21, 0
      %p137 = por %p135, %p136
      %s138 = ssub.s32 %s15, %s22
      %p139 = scmp.eq.s32.totalorder %s138, 0
      %s141 = sadd.s32 %s140, 1
      %s142 = scalar_select %p139, %s140, %s141
      %p145 = pneg %p139
      %p146 = scmp.eq.s32.totalorder %s15, 1
      %p147 = por %p145, %p146
      %p148 = scmp.ne.s32.totalorder %s140, %s143
      %p149 = scmp.eq.s32.totalorder %s15, 0
      %p150 = por %p148, %p149
      %p151 = scmp.ne.s32.totalorder %s140, %s143
      %p152 = scmp.eq.s32.totalorder %s20, 1
      %p153 = por %p151, %p152
      %p154 = scmp.ne.s32.totalorder %s143, %s144
      %p155 = scmp.eq.s32.totalorder %s20, 0
      %p156 = por %p154, %p155
      %p157 = scmp.ne.s32.totalorder %s143, %s144
      %p158 = scmp.eq.s32.totalorder %s21, 1
      %p159 = por %p157, %p158
      %p161 = scmp.ne.s32.totalorder %s144, %s160
      %p162 = scmp.eq.s32.totalorder %s21, 0
      %p163 = por %p161, %p162
      %p164 = scmp.le.s32.totalorder 1, %s15
      %p165 = scmp.lt.s32.totalorder %s15, 3
      %p166 = pnand %p164, %p165
      %p167 = pneg %p166
      // Predicated region
      $region9: #{tpu_custom_call.1} parent=5 // pred_check
        _
      $region10: #{tpu_custom_call.1} parent=5 // pred_check_branch
        %169 = sbr.rel (%p166) target = $region12
      $region11: #{tpu_custom_call.1} parent=5 // pred_region
        %s170 = ssub.s32 %s15, 1
        // Predicated region
        $region13: #{tpu_custom_call.1} parent=11 // pred_check
          %p171 = pneg %p88
        $region14: #{tpu_custom_call.1} parent=11 // pred_check_branch
          %173 = sbr.rel (%p171) target = $region16
        $region15: #{tpu_custom_call.1} parent=11 // pred_region
          %s175 = ssub.s32 1024, 1024
          %176 = vsyncadd [#allocation3], %s175
          %s177 = sshll.u32 [#allocation2], 4
          %s178 = int_to_ptr.vmem [resolvable:$true] %s177
          %183 = dma.hbm_to_vmem [thread:$0]  %s2, 1024, %s178, [#allocation3], 64, 64, 4
        $region16: #{tpu_custom_call.1} parent=11 // pred_fallthru
          _
        // Predicated region
        $region17: #{tpu_custom_call.1} parent=11 // pred_check
          %p184 = pneg %p109
        $region18: #{tpu_custom_call.1} parent=11 // pred_check_branch
          %186 = sbr.rel (%p184) target = $region20
        $region19: #{tpu_custom_call.1} parent=11 // pred_region
          _
        $region20: #{tpu_custom_call.1} parent=11 // pred_fallthru
          _
        // Predicated region
        $region21: #{tpu_custom_call.1} parent=11 // pred_check
          %p187 = pneg %p130
        $region22: #{tpu_custom_call.1} parent=11 // pred_check_branch
          %189 = sbr.rel (%p187) target = $region24
        $region23: #{tpu_custom_call.1} parent=11 // pred_region
          _
        $region24: #{tpu_custom_call.1} parent=11 // pred_fallthru
          _
      $region12: #{tpu_custom_call.1} parent=5 // pred_fallthru
        _
      %p190 = scmp.lt.s32.totalorder %s15, 2
      // Predicated region
      $region25: #{tpu_custom_call.1} parent=5 // pred_check
        %p191 = pneg %p190
      $region26: #{tpu_custom_call.1} parent=5 // pred_check_branch
        %193 = sbr.rel (%p191) target = $region28
      $region27: #{tpu_custom_call.1} parent=5 // pred_region
        // Predicated region
        $region29: #{tpu_custom_call.1} parent=27 // pred_check
          %p194 = pneg %p35
        $region30: #{tpu_custom_call.1} parent=27 // pred_check_branch
          %196 = sbr.rel (%p194) target = $region32
        $region31: #{tpu_custom_call.1} parent=27 // pred_region
          %p197 = scmp.lt.s32.totalorder %s15, 1
          %s198 = scalar_select %p197, %s15, 1
          %s199 = smul.addr %s198, 8
          %s200 = scalar_lea.vmem %s0, %s199
        $region32: #{tpu_custom_call.1} parent=27 // pred_fallthru
          _
        // Predicated region
        $region33: #{tpu_custom_call.1} parent=27 // pred_check
          %p201 = pneg %p61
        $region34: #{tpu_custom_call.1} parent=27 // pred_check_branch
          %203 = sbr.rel (%p201) target = $region36
        $region35: #{tpu_custom_call.1} parent=27 // pred_region
          %p204 = scmp.lt.s32.totalorder %s15, 1
          %s205 = scalar_select %p204, %s15, 1
          %s206 = smul.addr %s205, 4
          %s207 = scalar_lea.vmem %s1, %s206
        $region36: #{tpu_custom_call.1} parent=27 // pred_fallthru
          _
      $region28: #{tpu_custom_call.1} parent=5 // pred_fallthru
        _
      %p208 = scmp.le.s32.totalorder 1, %s15
      %p209 = scmp.lt.s32.totalorder %s15, 3
      %p210 = pnand %p208, %p209
      %p211 = pneg %p210
      // Predicated region
      $region37: #{tpu_custom_call.1} parent=5 // pred_check
        _
      $region38: #{tpu_custom_call.1} parent=5 // pred_check_branch
        %213 = sbr.rel (%p210) target = $region40
      $region39: #{tpu_custom_call.1} parent=5 // pred_region
        %s214 = ssub.s32 %s15, 1
        // Predicated region
        $region41: #{tpu_custom_call.1} parent=39 // pred_check
          %p215 = pneg %p88
        $region42: #{tpu_custom_call.1} parent=39 // pred_check_branch
          %217 = sbr.rel (%p215) target = $region44
        $region43: #{tpu_custom_call.1} parent=39 // pred_region
          %218 = dma.done [#allocation3], 1024
        $region44: #{tpu_custom_call.1} parent=39 // pred_fallthru
          _
        %p219 = scmp.lt.s32.totalorder %s20, 1
        %s220 = scalar_select %p219, %s20, 1
        %s221 = smul.addr %s220, 8
        %s222 = scalar_lea.vmem %s0, %s221
        %p223 = pneg %p41
        %p224 = pneg %p38
        %p225 = scmp.lt.s32.totalorder %s20, 1
        %s226 = scalar_select %p225, %s20, 1
        %s227 = smul.addr %s226, 4
        %s228 = scalar_lea.vmem %s1, %s227
        %p229 = pneg %p67
        %p230 = pneg %p64
        %p231 = pneg %p88
        %p232 = pneg %p85
        %p233 = pneg %p109
        %p234 = pneg %p106
        %p235 = pneg %p130
        %p236 = pneg %p127
        %p237 = pneg %p156
        %p238 = pneg %p153
        %s239 = sand.u32 %s143, 1
        %s240 = scalar_lea.sflag [#allocation4], %s239
        %s241 = sand.u32 %s143, 1
        %s242 = smul.addr %s241, 8
        %s243 = scalar_lea.vmem [#allocation5], %s242
        %p244 = scmp.lt.s32.totalorder %s20, 1
        %s245 = scalar_select %p244, %s20, 1
        %s246 = smul.addr %s245, 8
        %s247 = scalar_lea.vmem %s0, %s246
        %p248 = scmp.lt.s32.totalorder %s20, 1
        %s249 = scalar_select %p248, %s20, 1
        %s250 = smul.addr %s249, 4
        %s251 = scalar_lea.vmem %s1, %s250
        %v253 = vld [vmem:[%s247] sm:$0xff]
        %v254 = vlaneseq
        %v255 = vand.u32 %v254, 127
        %256 = vset.pattern.permute.xlu0 0
        %257 = vperm.xlu0 %256, %v253
        %v258 = vpop.permute.xlu0 %257
        %vm259 = vcmp.eq.s32.totalorder %v255, %v258
        %260 = vset.pattern.permute.xlu0 1
        %261 = vperm.xlu0 %260, %v253
        %v262 = vpop.permute.xlu0 %261
        %vm263 = vcmp.eq.s32.totalorder %v255, %v262
        %vm264 = vmor %vm259, %vm263
        %265 = vset.pattern.permute.xlu0 2
        %266 = vperm.xlu0 %265, %v253
        %v267 = vpop.permute.xlu0 %266
        %vm268 = vcmp.eq.s32.totalorder %v255, %v267
        %vm269 = vmor %vm264, %vm268
        %v270 = vsel %vm269, 1, 0
        %v271 = vcvt.s32.f32 %v270
        %v272 = vpack.c.bf16 %v271, %v271
        %v273 = vld [vmem:[#allocation2] sm:$0xf]
        %v274 = vld [vmem:[#allocation2 + $0x4] sm:$0xf]
        %v275 = vld [vmem:[#allocation2 + $0x8] sm:$0xf]
        %v276 = vld [vmem:[#allocation2 + $0xc] sm:$0xf]
        %v277 = vld [vmem:[#allocation2 + $0x10] sm:$0xf]
        %v278 = vld [vmem:[#allocation2 + $0x14] sm:$0xf]
        %v279 = vld [vmem:[#allocation2 + $0x18] sm:$0xf]
        %v280 = vld [vmem:[#allocation2 + $0x1c] sm:$0xf]
        %v281 = vld [vmem:[#allocation2 + $0x20] sm:$0xf]
        %v282 = vld [vmem:[#allocation2 + $0x24] sm:$0xf]
        %v283 = vld [vmem:[#allocation2 + $0x28] sm:$0xf]
        %v284 = vld [vmem:[#allocation2 + $0x2c] sm:$0xf]
        %v285 = vld [vmem:[#allocation2 + $0x30] sm:$0xf]
        %v286 = vld [vmem:[#allocation2 + $0x34] sm:$0xf]
        %v287 = vld [vmem:[#allocation2 + $0x38] sm:$0xf]
        %v288 = vld [vmem:[#allocation2 + $0x3c] sm:$0xf]
        %v289 = vld [vmem:[%s251] sm:$0xf]
        %v290 = vld [vmem:[%s3] sm:$0xf]
        %v291 = vld [vmem:[%s3 + $0x4] sm:$0xf]
        %v294 = vunpack.c.l.b16 %v290
        %v295 = vunpack.c.l.b16 %v291
        %v296 = vpack.c.b16 %v295, %v294
        %vm298 = vcmask 130048
        %v300 = vsel %vm298, %v289, 0
        %302 = vmatprep.subr.bf16.mxu0 0
        %303 = vmatpush1.bf16.msra.mxu0 %v296
        %304 = vmatprep.subr.bf16.mxu0 0
        %305 = vmatpush1.bf16.msra.mxu0 0
        %306 = vmatprep.subr.bf16.mxu0 0
        %307 = vmatpush1.bf16.msra.mxu0 0
        %308 = vmatprep.subr.bf16.mxu0 0
        %309 = vmatpush1.bf16.msra.mxu0 0
        %310 = vmatprep.subr.bf16.mxu0 0
        %311 = vmatpush1.bf16.msra.mxu0 0
        %312 = vmatprep.subr.bf16.mxu0 0
        %313 = vmatpush1.bf16.msra.mxu0 0
        %314 = vmatprep.subr.bf16.mxu0 0
        %315 = vmatpush1.bf16.msra.mxu0 0
        %316 = vmatprep.subr.bf16.mxu0 0
        %317 = vmatpush1.bf16.msra.mxu0 0
        %318 = vmatprep.subr.bf16.mxu0 0
        %319 = vmatpush1.bf16.msra.mxu0 0
        %320 = vmatprep.subr.bf16.mxu0 0
        %321 = vmatpush1.bf16.msra.mxu0 0
        %322 = vmatprep.subr.bf16.mxu0 0
        %323 = vmatpush1.bf16.msra.mxu0 0
        %324 = vmatprep.subr.bf16.mxu0 0
        %325 = vmatpush1.bf16.msra.mxu0 0
        %326 = vmatprep.subr.bf16.mxu0 0
        %327 = vmatpush1.bf16.msra.mxu0 0
        %328 = vmatprep.subr.bf16.mxu0 0
        %329 = vmatpush1.bf16.msra.mxu0 0
        %330 = vmatprep.subr.bf16.mxu0 0
        %331 = vmatpush1.bf16.msra.mxu0 0
        %332 = vmatprep.subr.bf16.mxu0 0
        %333 = vmatpush1.bf16.msra.mxu0 0
        %334 = vmatprep.mubr.bf16.mxu0 0
        %335 = vmatmul.mubr.bf16.gmra.mrb[0].mxu0 %v300
        %v336 = vpop.f32.mrb[0].mxu0
        %v337 = vadd.f32 0.0, %v336
        %v338 = vpop.f32.mrb[0].mxu0
        %v339 = vpop.f32.mrb[0].mxu0
        %v340 = vpop.f32.mrb[0].mxu0
        %341 = vdwg.mxu0
        %v358 = vunpack.c.l.b16 %v273
        %v359 = vunpack.c.l.b16 %v274
        %v360 = vunpack.c.l.b16 %v275
        %v361 = vunpack.c.l.b16 %v276
        %v362 = vunpack.c.l.b16 %v277
        %v363 = vunpack.c.l.b16 %v278
        %v364 = vunpack.c.l.b16 %v279
        %v365 = vunpack.c.l.b16 %v280
        %v366 = vunpack.c.l.b16 %v281
        %v367 = vunpack.c.l.b16 %v282
        %v368 = vunpack.c.l.b16 %v283
        %v369 = vunpack.c.l.b16 %v284
        %v370 = vunpack.c.l.b16 %v285
        %v371 = vunpack.c.l.b16 %v286
        %v372 = vunpack.c.l.b16 %v287
        %v373 = vunpack.c.l.b16 %v288
        %v374 = vpack.c.b16 %v359, %v358
        %v375 = vpack.c.b16 %v361, %v360
        %v376 = vpack.c.b16 %v363, %v362
        %v377 = vpack.c.b16 %v365, %v364
        %v378 = vpack.c.b16 %v367, %v366
        %v379 = vpack.c.b16 %v369, %v368
        %v380 = vpack.c.b16 %v371, %v370
        %v381 = vpack.c.b16 %v373, %v372
        %390 = vmatprep.subr.bf16.mxu0 0
        %391 = vmatpush1.bf16.msra.mxu0 %v374
        %392 = vmatprep.subr.bf16.mxu0 0
        %393 = vmatpush1.bf16.msra.mxu0 %v375
        %394 = vmatprep.subr.bf16.mxu0 0
        %395 = vmatpush1.bf16.msra.mxu0 %v376
        %396 = vmatprep.subr.bf16.mxu0 0
        %397 = vmatpush1.bf16.msra.mxu0 %v377
        %398 = vmatprep.subr.bf16.mxu0 0
        %399 = vmatpush1.bf16.msra.mxu0 %v378
        %400 = vmatprep.subr.bf16.mxu0 0
        %401 = vmatpush1.bf16.msra.mxu0 %v379
        %402 = vmatprep.subr.bf16.mxu0 0
        %403 = vmatpush1.bf16.msra.mxu0 %v380
        %404 = vmatprep.subr.bf16.mxu0 0
        %405 = vmatpush1.bf16.msra.mxu0 %v381
        %406 = vmatprep.subr.bf16.mxu0 0
        %407 = vmatpush1.bf16.msra.mxu0 0
        %408 = vmatprep.subr.bf16.mxu0 0
        %409 = vmatpush1.bf16.msra.mxu0 0
        %410 = vmatprep.subr.bf16.mxu0 0
        %411 = vmatpush1.bf16.msra.mxu0 0
        %412 = vmatprep.subr.bf16.mxu0 0
        %413 = vmatpush1.bf16.msra.mxu0 0
        %414 = vmatprep.subr.bf16.mxu0 0
        %415 = vmatpush1.bf16.msra.mxu0 0
        %416 = vmatprep.subr.bf16.mxu0 0
        %417 = vmatpush1.bf16.msra.mxu0 0
        %418 = vmatprep.subr.bf16.mxu0 0
        %419 = vmatpush1.bf16.msra.mxu0 0
        %420 = vmatprep.subr.bf16.mxu0 0
        %421 = vmatpush1.bf16.msra.mxu0 0
        %422 = vmatprep.mubr.bf16.mxu0 0
        %423 = vmatmul.mubr.bf16.gmra.mrb[0].mxu0 %v272
        %v424 = vpop.f32.mrb[0].mxu0
        %v425 = vadd.f32 %v337, %v424
        %v426 = vpop.f32.mrb[0].mxu0
        %v427 = vpop.f32.mrb[0].mxu0
        %v428 = vpop.f32.mrb[0].mxu0
        %429 = vdwg.mxu0
        %v430 = vld [vmem:[%s4] sm:$0x1]
        %v432 = vlaneseq
        %v433 = vshrl.u32 %v432, 7
        %v434 = vsub.s32 0, %v433
        %v435 = vrot.slane %v430, %v434
        %v437 = vadd.f32 %v425, %v435
        %438 = vst [vmem:[%s243] sm:$0xff] %v437
        %s439 = sand.u32 %s143, 1
        %s440 = scalar_lea.sflag [#allocation4], %s439
        %s441 = sand.u32 %s143, 1
        %s442 = smul.addr %s441, 8
        %s443 = scalar_lea.vmem [#allocation5], %s442
        // Predicated region
        $region45: #{tpu_custom_call.1} parent=39 // pred_check
          %p444 = pneg %p153
        $region46: #{tpu_custom_call.1} parent=39 // pred_check_branch
          %446 = sbr.rel (%p444) target = $region48
        $region47: #{tpu_custom_call.1} parent=39 // pred_region
          %s448 = ssub.s32 128, 128
          %449 = vsyncadd %s440, %s448
          %s450 = smul.addr %s20, 128
          %s451 = scalar_lea.hbm %s5, %s450
          %s453 = sshll.u32 %s443, 4
          %s454 = int_to_ptr.vmem [resolvable:$true] %s453
          %456 = dma.vmem_to_hbm [thread:$0]  %s454, 128, %s451, %s440
        $region48: #{tpu_custom_call.1} parent=39 // pred_fallthru
          _
      $region40: #{tpu_custom_call.1} parent=5 // pred_fallthru
        _
      %p457 = scmp.le.s32.totalorder 2, %s15
      // Predicated region
      $region49: #{tpu_custom_call.1} parent=5 // pred_check
        %p458 = pneg %p457
      $region50: #{tpu_custom_call.1} parent=5 // pred_check_branch
        %460 = sbr.rel (%p458) target = $region52
      $region51: #{tpu_custom_call.1} parent=5 // pred_region
        %s461 = ssub.s32 %s15, 2
        // Predicated region
        $region53: #{tpu_custom_call.1} parent=51 // pred_check
          %p462 = pneg %p159
        $region54: #{tpu_custom_call.1} parent=51 // pred_check_branch
          %464 = sbr.rel (%p462) target = $region56
        $region55: #{tpu_custom_call.1} parent=51 // pred_region
          %s465 = sand.u32 %s144, 1
          %s466 = scalar_lea.sflag [#allocation4], %s465
          %s467 = sand.u32 %s144, 1
          %s468 = smul.addr %s467, 8
          %s469 = scalar_lea.vmem [#allocation5], %s468
          %470 = dma.done %s466, 128
        $region56: #{tpu_custom_call.1} parent=51 // pred_fallthru
          _
      $region52: #{tpu_custom_call.1} parent=5 // pred_fallthru
        _
    $region6: #{tpu_custom_call.1} parent=1 // loop_footer
      %s19 = sadd.s32 1, %s15
    $region7: #{tpu_custom_call.1} parent=1 // loop_footer_branch
      %14 = sbr.rel target = $region3
    $region8: #{tpu_custom_call.1} parent=1 // loop_exit
      _
    %471 = vsyncpa [#allocation3], 1
    %s472 = scalar_lea.sflag [#allocation3], 1
    %473 = vsyncpa %s472, 1
    %474 = vsyncpa [#allocation4], 1
    %s475 = scalar_lea.sflag [#allocation4], 1
    %476 = vsyncpa %s475, 1

</llo_original>
